<compile_context>
chip_gen: v5e
topology: v5e:2x2
jax: 0.10.0
libtpu: 0.0.40
codegen_flags: <defaults>
</compile_context>

<pallas_src>
import math

import jax
import jax.numpy as jnp
from jax.experimental import pallas as pl
from jax.experimental.pallas import tpu as pltpu

# ---------------------------------------------------------------------------
# Problem sizes (small RL policy MLP)
# ---------------------------------------------------------------------------
BATCH = 8
NUM_INPUTS = 16
HIDDEN_DIM = 32
NUM_ACTIONS = 4
HEAD_DIM = 2 * NUM_ACTIONS            # mean || log_std lanes
CLIP_STDDEV = 1000.0
CLIP_STD_THRESHOLD = math.log(CLIP_STDDEV)
ACTIVATION = "relu"                    # 'relu' or 'tanh'

LANE = 128


def _round_up(x, m):
    return (x + m - 1) // m * m


H_P = _round_up(HIDDEN_DIM, LANE)      # 128 (hidden dims padded to full lanes)

MAX_TILE_B = 1024                      # ~85% of HBM roofline at 512+ row tiles
SPLIT_THRESHOLD = 512                  # above this, force >=2 grid steps (v7x 2 TCs)


def _act(x):
    if ACTIVATION == "relu":
        return jnp.maximum(x, 0.0)
    elif ACTIVATION == "tanh":
        return jnp.tanh(x)
    else:
        raise ValueError(f"unknown activation {ACTIVATION}")


# ---------------------------------------------------------------------------
# Pallas kernel: whole forward pass (3 matmuls, fused heads)
# ---------------------------------------------------------------------------
def gaussian_forward_kernel(
    state_ref,   # (TILE_B, NUM_INPUTS)
    w1_ref,      # (NUM_INPUTS, H_P)
    w2_ref,      # (H_P, H_P)
    wh_ref,      # (H_P, HEAD_DIM)  fused [Wm | Ws]
    ch_ref,      # (2, H_P): row0=b1, row1=b2   (zero-padded past HIDDEN_DIM)
    ca_ref,      # (4, HEAD_DIM): row0=b_head, row1=scale, row2=shift, row3=mask
    out_ref,     # (TILE_B, HEAD_DIM): lanes [0,A)=mean, [A,2A)=log_std
):
    x = state_ref[...]
    b1 = ch_ref[0:1, :]
    b2 = ch_ref[1:2, :]
    bh = ca_ref[0:1, :]
    scale = ca_ref[1:2, :]
    shift = ca_ref[2:3, :]
    mask = ca_ref[3:4, :]     # 1.0 on mean lanes, 0.0 on log_std lanes

    # two hidden layers
    h1 = _act(jnp.dot(x, w1_ref[...], preferred_element_type=jnp.float32) + b1)
    h2 = _act(jnp.dot(h1, w2_ref[...], preferred_element_type=jnp.float32) + b2)

    # fused head matmul: one MXU pass produces both mean and log_std pre-acts
    head = jnp.dot(h2, wh_ref[...], preferred_element_type=jnp.float32) + bh

    # mean path: tanh then affine rescale into [action_min, action_max]
    mean_branch = jnp.tanh(head) * scale + shift
    # log_std path: clamp (static config; module skips clamp if clip_stddev<=0)
    if CLIP_STDDEV > 0:
        logstd_branch = jnp.clip(head, -CLIP_STD_THRESHOLD, CLIP_STD_THRESHOLD)
    else:
        logstd_branch = head

    # precomputed per-lane mask select (no iota/compare per tile)
    out_ref[...] = mask * mean_branch + (1.0 - mask) * logstd_branch


# ---------------------------------------------------------------------------
# One-time parameter packing (hoisted out of the per-call forward path)
# ---------------------------------------------------------------------------
def _pad_to(x, shape):
    pads = [(0, s - d) for d, s in zip(x.shape, shape)]
    return jnp.pad(x, pads)


def pack_params(params, action_min, action_max):
    """Pad/fuse parameters into kernel-ready slabs.  Call once per param update."""
    w1 = _pad_to(params["w1"], (NUM_INPUTS, H_P))
    w2 = _pad_to(params["w2"], (H_P, H_P))
    wh = _pad_to(
        jnp.concatenate([params["wm"], params["ws"]], axis=1), (H_P, HEAD_DIM)
    )

    consts_h = jnp.zeros((2, H_P), jnp.float32)
    consts_h = consts_h.at[0, :HIDDEN_DIM].set(params["b1"][0])
    consts_h = consts_h.at[1, :HIDDEN_DIM].set(params["b2"][0])

    b_head = jnp.concatenate([params["bm"], params["bs"]], axis=1)  # (1, 2A)
    scale = (action_max - action_min) * 0.5
    shift = (action_max + action_min) * 0.5

    consts_a = jnp.zeros((4, HEAD_DIM), jnp.float32)
    consts_a = consts_a.at[0, :].set(b_head[0])
    consts_a = consts_a.at[1, :NUM_ACTIONS].set(scale[0])
    consts_a = consts_a.at[2, :NUM_ACTIONS].set(shift[0])
    consts_a = consts_a.at[3, :NUM_ACTIONS].set(1.0)

    return dict(w1=w1, w2=w2, wh=wh, ch=consts_h, ca=consts_a)


# ---------------------------------------------------------------------------
# Forward wrapper: batch tiling only (no per-call parameter work).
# ---------------------------------------------------------------------------
def _choose_tiling(B):
    b8 = _round_up(B, 8)
    if b8 <= SPLIT_THRESHOLD:
        n_tiles = 1                                 # tiny batch: one grid step
    else:
        n_tiles = max(2, -(-b8 // MAX_TILE_B))      # >=2 steps -> both v7x TCs
    tile_b = _round_up(-(-b8 // n_tiles), 8)
    b_pad = n_tiles * tile_b                        # minimal tail padding
    return tile_b, b_pad, n_tiles


def gaussian_forward(state, packed):
    """Gaussian policy forward pass as one Pallas call.

    state: (B, NUM_INPUTS) f32
    packed: output of pack_params()
    returns (mean, log_std): each (B, NUM_ACTIONS) f32
    """
    B = state.shape[0]
    tile_b, b_pad, n_tiles = _choose_tiling(B)
    if b_pad != B:
        state = jnp.pad(state, ((0, b_pad - B), (0, 0)))

    out = pl.pallas_call(
        gaussian_forward_kernel,
        out_shape=jax.ShapeDtypeStruct((b_pad, HEAD_DIM), jnp.float32),
        grid=(n_tiles,),
        in_specs=[
            pl.BlockSpec((tile_b, NUM_INPUTS), lambda i: (i, 0)),  # state: batch-tiled
            pl.BlockSpec((NUM_INPUTS, H_P), lambda i: (0, 0)),     # weights: VMEM-resident
            pl.BlockSpec((H_P, H_P), lambda i: (0, 0)),
            pl.BlockSpec((H_P, HEAD_DIM), lambda i: (0, 0)),
            pl.BlockSpec((2, H_P), lambda i: (0, 0)),              # hidden biases
            pl.BlockSpec((4, HEAD_DIM), lambda i: (0, 0)),         # head consts + mask
        ],
        out_specs=pl.BlockSpec((tile_b, HEAD_DIM), lambda i: (i, 0)),
        compiler_params=pltpu.CompilerParams(
            dimension_semantics=("parallel",),  # shards batch tiles across v7x's 2 TCs
        ),
    )(state, packed["w1"], packed["w2"], packed["wh"], packed["ch"], packed["ca"])

    mean = out[:B, :NUM_ACTIONS]
    log_std = out[:B, NUM_ACTIONS:HEAD_DIM]
    return mean, log_std


# ---------------------------------------------------------------------------
# Deterministic parameter init (mimics default PyTorch Linear init:
# uniform(-1/sqrt(fan_in), 1/sqrt(fan_in)) for both weight and bias).
# ---------------------------------------------------------------------------
def init_params(key):
    def linear(key, fan_in, fan_out):
        kw, kb = jax.random.split(key)
        bound = 1.0 / math.sqrt(fan_in)
        # stored as (in, out) so the kernel does x @ W
        w = jax.random.uniform(kw, (fan_in, fan_out), jnp.float32, -bound, bound)
        b = jax.random.uniform(kb, (1, fan_out), jnp.float32, -bound, bound)
        return w, b

    k1, k2, k3, k4 = jax.random.split(key, 4)
    w1, b1 = linear(k1, NUM_INPUTS, HIDDEN_DIM)
    w2, b2 = linear(k2, HIDDEN_DIM, HIDDEN_DIM)
    wm, bm = linear(k3, HIDDEN_DIM, NUM_ACTIONS)
    ws, bs = linear(k4, HIDDEN_DIM, NUM_ACTIONS)
    return dict(w1=w1, b1=b1, w2=w2, b2=b2, wm=wm, bm=bm, ws=ws, bs=bs)


# Pure-JAX reference for correctness sanity check (unpadded math).
def gaussian_forward_ref(state, p, amin, amax):
    h1 = _act(state @ p["w1"] + p["b1"])
    h2 = _act(h1 @ p["w2"] + p["b2"])
    mean = jnp.tanh(h2 @ p["wm"] + p["bm"])
    mean = (mean + 1.0) / 2.0 * (amax - amin) + amin
    log_std = h2 @ p["ws"] + p["bs"]
    if CLIP_STDDEV > 0:
        log_std = jnp.clip(log_std, -CLIP_STD_THRESHOLD, CLIP_STD_THRESHOLD)
    return mean, log_std


# TODO(synk): rsample/sample/log_prob (Normal distribution sampling & log-probs)
# are host/JAX-level operations on (mean, log_std) and are not part of this kernel.

if __name__ == "__main__":
    key = jax.random.PRNGKey(0)
    k_state, k_params, k_big = jax.random.split(key, 3)

    params = init_params(k_params)
    # Synthetic action-space bounds (e.g. a Box(-2, 2) action space).
    action_min = jnp.full((1, NUM_ACTIONS), -2.0, dtype=jnp.float32)
    action_max = jnp.full((1, NUM_ACTIONS), 2.0, dtype=jnp.float32)

    # One-time parameter packing (hoisted out of the forward path).
    packed = jax.tree.map(jnp.asarray, pack_params(params, action_min, action_max))

    fwd = jax.jit(gaussian_forward)

    # --- small-batch test (B=8, the module's typical per-step call) ---------
    state = jax.random.normal(k_state, (BATCH, NUM_INPUTS), dtype=jnp.float32)
    mean, log_std = fwd(state, packed)
    jax.block_until_ready((mean, log_std))
    mean_ref, log_std_ref = gaussian_forward_ref(state, params, action_min, action_max)
    assert mean.shape == (BATCH, NUM_ACTIONS) and log_std.shape == (BATCH, NUM_ACTIONS)
    assert jnp.allclose(mean, mean_ref, atol=1e-5, rtol=1e-5)
    assert jnp.allclose(log_std, log_std_ref, atol=1e-5, rtol=1e-5)

    # --- ragged larger-batch test (exercises batch padding / tiling path) ---
    B2 = 300
    state2 = jax.random.normal(k_big, (B2, NUM_INPUTS), dtype=jnp.float32)
    mean2, log_std2 = fwd(state2, packed)
    jax.block_until_ready((mean2, log_std2))
    mean2_ref, log_std2_ref = gaussian_forward_ref(state2, params, action_min, action_max)
    assert mean2.shape == (B2, NUM_ACTIONS) and log_std2.shape == (B2, NUM_ACTIONS)
    assert jnp.allclose(mean2, mean2_ref, atol=1e-5, rtol=1e-5)
    assert jnp.allclose(log_std2, log_std2_ref, atol=1e-5, rtol=1e-5)

    print("KERNEL_OK")
</pallas_src>

<mosaic_0001>
module attributes {stable_mosaic.version = 11 : i64} {
  func.func @gaussian_forward_kernel(%arg0: i32, %arg1: memref<8x16xf32, #tpu.memory_space<vmem>>, %arg2: memref<16x128xf32, #tpu.memory_space<vmem>>, %arg3: memref<128x128xf32, #tpu.memory_space<vmem>>, %arg4: memref<128x8xf32, #tpu.memory_space<vmem>>, %arg5: memref<2x128xf32, #tpu.memory_space<vmem>>, %arg6: memref<4x8xf32, #tpu.memory_space<vmem>>, %arg7: memref<8x8xf32, #tpu.memory_space<vmem>>) attributes {dimension_semantics = [#tpu.dimension_semantics<parallel>], iteration_bounds = array<i64: 1>, scalar_prefetch = 0 : i64, scratch_operands = 0 : i64, tpu.core_type = #tpu.core_type<tc>, window_params = [{transform_indices = @transform_0, window_bounds = array<i64: 8, 16>}, {pipeline_mode = #tpu.pipeline_mode<synchronous>, transform_indices = @transform_1, window_bounds = array<i64: 16, 128>}, {pipeline_mode = #tpu.pipeline_mode<synchronous>, transform_indices = @transform_2, window_bounds = array<i64: 128, 128>}, {pipeline_mode = #tpu.pipeline_mode<synchronous>, transform_indices = @transform_3, window_bounds = array<i64: 128, 8>}, {pipeline_mode = #tpu.pipeline_mode<synchronous>, transform_indices = @transform_4, window_bounds = array<i64: 2, 128>}, {pipeline_mode = #tpu.pipeline_mode<synchronous>, transform_indices = @transform_5, window_bounds = array<i64: 4, 8>}, {transform_indices = @transform_6, window_bounds = array<i64: 8, 8>}]} {
    %c0 = arith.constant 0 : index
    %c0_0 = arith.constant 0 : index
    %0 = vector.load %arg1[%c0, %c0_0] : memref<8x16xf32, #tpu.memory_space<vmem>>, vector<8x16xf32>
    %c0_1 = arith.constant 0 : index
    %c0_2 = arith.constant 0 : index
    %1 = vector.load %arg5[%c0_1, %c0_2] : memref<2x128xf32, #tpu.memory_space<vmem>>, vector<1x128xf32>
    %c1 = arith.constant 1 : index
    %c0_3 = arith.constant 0 : index
    %2 = vector.load %arg5[%c1, %c0_3] : memref<2x128xf32, #tpu.memory_space<vmem>>, vector<1x128xf32>
    %c0_4 = arith.constant 0 : index
    %c0_5 = arith.constant 0 : index
    %3 = vector.load %arg6[%c0_4, %c0_5] : memref<4x8xf32, #tpu.memory_space<vmem>>, vector<1x8xf32>
    %c1_6 = arith.constant 1 : index
    %c0_7 = arith.constant 0 : index
    %4 = vector.load %arg6[%c1_6, %c0_7] : memref<4x8xf32, #tpu.memory_space<vmem>>, vector<1x8xf32>
    %c2 = arith.constant 2 : index
    %c0_8 = arith.constant 0 : index
    %5 = vector.load %arg6[%c2, %c0_8] : memref<4x8xf32, #tpu.memory_space<vmem>>, vector<1x8xf32>
    %c3 = arith.constant 3 : index
    %c0_9 = arith.constant 0 : index
    %6 = vector.load %arg6[%c3, %c0_9] : memref<4x8xf32, #tpu.memory_space<vmem>>, vector<1x8xf32>
    %c0_10 = arith.constant 0 : index
    %c0_11 = arith.constant 0 : index
    %7 = vector.load %arg2[%c0_10, %c0_11] : memref<16x128xf32, #tpu.memory_space<vmem>>, vector<16x128xf32>
    %cst = arith.constant dense<0.000000e+00> : vector<8x128xf32>
    %8 = tpu.matmul %0, %7, %cst {dimension_numbers = #tpu.dot_dimension_numbers<[1], [0], [0], [1], [0, 0, 1, 1], [], []>} : vector<8x16xf32>, vector<16x128xf32>, vector<8x128xf32> -> vector<8x128xf32>
    %9 = vector.broadcast %1 : vector<1x128xf32> to vector<8x128xf32>
    %10 = arith.addf %8, %9 : vector<8x128xf32>
    %cst_12 = arith.constant 0.000000e+00 : f32
    %11 = vector.broadcast %cst_12 : f32 to vector<8x128xf32>
    %12 = arith.maximumf %10, %11 : vector<8x128xf32>
    %c0_13 = arith.constant 0 : index
    %c0_14 = arith.constant 0 : index
    %13 = vector.load %arg3[%c0_13, %c0_14] : memref<128x128xf32, #tpu.memory_space<vmem>>, vector<128x128xf32>
    %cst_15 = arith.constant dense<0.000000e+00> : vector<8x128xf32>
    %14 = tpu.matmul %12, %13, %cst_15 {dimension_numbers = #tpu.dot_dimension_numbers<[1], [0], [0], [1], [0, 0, 1, 1], [], []>} : vector<8x128xf32>, vector<128x128xf32>, vector<8x128xf32> -> vector<8x128xf32>
    %15 = vector.broadcast %2 : vector<1x128xf32> to vector<8x128xf32>
    %16 = arith.addf %14, %15 : vector<8x128xf32>
    %cst_16 = arith.constant 0.000000e+00 : f32
    %17 = vector.broadcast %cst_16 : f32 to vector<8x128xf32>
    %18 = arith.maximumf %16, %17 : vector<8x128xf32>
    %c0_17 = arith.constant 0 : index
    %c0_18 = arith.constant 0 : index
    %19 = vector.load %arg4[%c0_17, %c0_18] : memref<128x8xf32, #tpu.memory_space<vmem>>, vector<128x8xf32>
    %cst_19 = arith.constant dense<0.000000e+00> : vector<8x8xf32>
    %20 = tpu.matmul %18, %19, %cst_19 {dimension_numbers = #tpu.dot_dimension_numbers<[1], [0], [0], [1], [0, 0, 1, 1], [], []>} : vector<8x128xf32>, vector<128x8xf32>, vector<8x8xf32> -> vector<8x8xf32>
    %21 = vector.broadcast %3 : vector<1x8xf32> to vector<8x8xf32>
    %22 = arith.addf %20, %21 : vector<8x8xf32>
    %23 = math.tanh %22 : vector<8x8xf32>
    %24 = vector.broadcast %4 : vector<1x8xf32> to vector<8x8xf32>
    %25 = arith.mulf %23, %24 : vector<8x8xf32>
    %26 = vector.broadcast %5 : vector<1x8xf32> to vector<8x8xf32>
    %27 = arith.addf %25, %26 : vector<8x8xf32>
    %cst_20 = arith.constant -6.90775537 : f32
    %cst_21 = arith.constant 6.90775537 : f32
    %28 = vector.broadcast %cst_20 : f32 to vector<8x8xf32>
    %29 = arith.maximumf %28, %22 : vector<8x8xf32>
    %30 = vector.broadcast %cst_21 : f32 to vector<8x8xf32>
    %31 = arith.minimumf %30, %29 : vector<8x8xf32>
    %32 = vector.broadcast %6 : vector<1x8xf32> to vector<8x8xf32>
    %33 = arith.mulf %32, %27 : vector<8x8xf32>
    %cst_22 = arith.constant 1.000000e+00 : f32
    %34 = vector.broadcast %cst_22 : f32 to vector<1x8xf32>
    %35 = arith.subf %34, %6 : vector<1x8xf32>
    %36 = vector.broadcast %35 : vector<1x8xf32> to vector<8x8xf32>
    %37 = arith.mulf %36, %31 : vector<8x8xf32>
    %38 = arith.addf %33, %37 : vector<8x8xf32>
    %c0_23 = arith.constant 0 : index
    %c0_24 = arith.constant 0 : index
    %39 = vector.load %arg7[%c0_23, %c0_24] : memref<8x8xf32, #tpu.memory_space<vmem>>, vector<8x8xf32>
    tpu.vector_store %arg7[%c0_23, %c0_24], %38 {strides = array<i32>} : memref<8x8xf32, #tpu.memory_space<vmem>>, vector<8x8xf32>,
    return
  }
  func.func @transform_0(%arg0: i32) -> (i32, i32) {
    %c0_i32 = arith.constant 0 : i32
    %c0_i32_0 = arith.constant 0 : i32
    return %arg0, %c0_i32 : i32, i32
  }
  func.func @transform_1(%arg0: i32) -> (i32, i32) {
    %c0_i32 = arith.constant 0 : i32
    %c0_i32_0 = arith.constant 0 : i32
    %c0_i32_1 = arith.constant 0 : i32
    return %c0_i32, %c0_i32_0 : i32, i32
  }
  func.func @transform_2(%arg0: i32) -> (i32, i32) {
    %c0_i32 = arith.constant 0 : i32
    %c0_i32_0 = arith.constant 0 : i32
    %c0_i32_1 = arith.constant 0 : i32
    return %c0_i32, %c0_i32_0 : i32, i32
  }
  func.func @transform_3(%arg0: i32) -> (i32, i32) {
    %c0_i32 = arith.constant 0 : i32
    %c0_i32_0 = arith.constant 0 : i32
    %c0_i32_1 = arith.constant 0 : i32
    return %c0_i32, %c0_i32_0 : i32, i32
  }
  func.func @transform_4(%arg0: i32) -> (i32, i32) {
    %c0_i32 = arith.constant 0 : i32
    %c0_i32_0 = arith.constant 0 : i32
    %c0_i32_1 = arith.constant 0 : i32
    return %c0_i32, %c0_i32_0 : i32, i32
  }
  func.func @transform_5(%arg0: i32) -> (i32, i32) {
    %c0_i32 = arith.constant 0 : i32
    %c0_i32_0 = arith.constant 0 : i32
    %c0_i32_1 = arith.constant 0 : i32
    return %c0_i32, %c0_i32_0 : i32, i32
  }
  func.func @transform_6(%arg0: i32) -> (i32, i32) {
    %c0_i32 = arith.constant 0 : i32
    %c0_i32_0 = arith.constant 0 : i32
    return %arg0, %c0_i32 : i32, i32
  }
}

</mosaic_0001>

<llo_original>
// kernel: gaussian_forward.1
$region0: #{gaussian_forward.1}
  #allocation0 [shape = 'u32[]', space=smem, size = 0x4, offset = 0x4, fixed_abs, tag = 'smem constant byte address 0x4 - core index']
  #allocation1 [shape = 'u32[72,128]{1,0:T(1,128)}', space=vmem, size = 0x9000, scoped, tag = 'internal scratch']
  %s0 = inlined_call_operand.vmem [shape: f32[8,16], index: 0, kind: input, shape index: {}]
  %s1 = inlined_call_operand.hbm [shape: f32[16,128], index: 1, kind: input, shape index: {}]
  %s2 = inlined_call_operand.vmem [shape: f32[128,128], index: 2, kind: input, shape index: {}]
  %s3 = inlined_call_operand.vmem [shape: f32[128,8], index: 3, kind: input, shape index: {}]
  %s4 = inlined_call_operand.vmem [shape: f32[2,128], index: 4, kind: input, shape index: {}]
  %s5 = inlined_call_operand.hbm [shape: f32[4,8], index: 5, kind: input, shape index: {}]
  %s6 = inlined_call_operand.vmem [shape: f32[8,8], index: 6, kind: output, shape index: {}]
  %s7 = sld [smem:[#allocation0]]
  $region42: #{gaussian_forward.1} parent=0
    _
  %s9 = ssub.s32 1, %s7
  %s10 = scalar_select 0, %s9, %s7
  $region1: #{gaussian_forward.1} parent=0
    #allocation2 [shape = 'u8[8192]{0}', space=vmem, size = 0x2000, scoped, tag = 'input window, operand 1, single buffered']
    #allocation3 [shape = 's32[1]{0}', space=sflag, size = 0x4, scoped, tag = 'scoped memory for gaussian_forward.1']
    #allocation4 [shape = 'u8[2048]{0}', space=vmem, size = 0x800, scoped, tag = 'input window, operand 5, single buffered']
    #allocation5 [shape = 's32[1]{0}', space=sflag, size = 0x4, scoped, tag = 'scoped memory for gaussian_forward.1']
    %11 = vsyncpa [#allocation3], 0
    %12 = vsyncpa [#allocation5], 0
    // Predicated region
    $region2: #{gaussian_forward.1} parent=1 // pred_check
      _
    $region3: #{gaussian_forward.1} parent=1 // pred_check_branch
      %14 = sbr.rel (0) target = $region5
    $region4: #{gaussian_forward.1} parent=1 // pred_region
      _
    $region5: #{gaussian_forward.1} parent=1 // pred_fallthru
      _
    // Predicated region
    $region6: #{gaussian_forward.1} parent=1 // pred_check
      _
    $region7: #{gaussian_forward.1} parent=1 // pred_check_branch
      %16 = sbr.rel (0) target = $region9
    $region8: #{gaussian_forward.1} parent=1 // pred_region
      %18 = vsyncadd [#allocation3], 0
      %s19 = sshll.u32 %s1, 4
      %s20 = int_to_ptr.hbm [resolvable:$true] %s19
      %s21 = sshll.u32 [#allocation2], 4
      %s22 = int_to_ptr.vmem [resolvable:$true] %s21
      %27 = dma.hbm_to_vmem [thread:$0]  %s20, 256, %s22, [#allocation3], 128, 128, 8
    $region9: #{gaussian_forward.1} parent=1 // pred_fallthru
      _
    // Predicated region
    $region10: #{gaussian_forward.1} parent=1 // pred_check
      _
    $region11: #{gaussian_forward.1} parent=1 // pred_check_branch
      %29 = sbr.rel (0) target = $region13
    $region12: #{gaussian_forward.1} parent=1 // pred_region
      _
    $region13: #{gaussian_forward.1} parent=1 // pred_fallthru
      _
    // Predicated region
    $region14: #{gaussian_forward.1} parent=1 // pred_check
      _
    $region15: #{gaussian_forward.1} parent=1 // pred_check_branch
      %31 = sbr.rel (0) target = $region17
    $region16: #{gaussian_forward.1} parent=1 // pred_region
      _
    $region17: #{gaussian_forward.1} parent=1 // pred_fallthru
      _
    // Predicated region
    $region18: #{gaussian_forward.1} parent=1 // pred_check
      _
    $region19: #{gaussian_forward.1} parent=1 // pred_check_branch
      %33 = sbr.rel (0) target = $region21
    $region20: #{gaussian_forward.1} parent=1 // pred_region
      _
    $region21: #{gaussian_forward.1} parent=1 // pred_fallthru
      _
    // Predicated region
    $region22: #{gaussian_forward.1} parent=1 // pred_check
      _
    $region23: #{gaussian_forward.1} parent=1 // pred_check_branch
      %35 = sbr.rel (0) target = $region25
    $region24: #{gaussian_forward.1} parent=1 // pred_region
      %37 = vsyncadd [#allocation5], 0
      %s39 = sshll.u32 %s5, 4
      %s40 = int_to_ptr.hbm [resolvable:$true] %s39
      %s41 = sshll.u32 [#allocation4], 4
      %s42 = int_to_ptr.vmem [resolvable:$true] %s41
      %44 = dma.hbm_to_vmem [thread:$0]  %s40, 64, %s42, [#allocation5]
    $region25: #{gaussian_forward.1} parent=1 // pred_fallthru
      _
    // Predicated region
    $region26: #{gaussian_forward.1} parent=1 // pred_check
      _
    $region27: #{gaussian_forward.1} parent=1 // pred_check_branch
      %46 = sbr.rel (0) target = $region29
    $region28: #{gaussian_forward.1} parent=1 // pred_region
      %48 = dma.done [#allocation3], 256
    $region29: #{gaussian_forward.1} parent=1 // pred_fallthru
      _
    // Predicated region
    $region30: #{gaussian_forward.1} parent=1 // pred_check
      _
    $region31: #{gaussian_forward.1} parent=1 // pred_check_branch
      %50 = sbr.rel (0) target = $region33
    $region32: #{gaussian_forward.1} parent=1 // pred_region
      %52 = dma.done [#allocation5], 64
    $region33: #{gaussian_forward.1} parent=1 // pred_fallthru
      _
    %v53 = vld [vmem:[%s0] sm:$0xff]
    %v54 = vld [vmem:[%s4] sm:$0x1]
    %v55 = vld [vmem:[%s4 + $0x1] sm:$0x1]
    %v56 = vld [vmem:[#allocation4] sm:$0x1]
    %v57 = vld [vmem:[#allocation4 + $0x1] sm:$0x1]
    %v58 = vld [vmem:[#allocation4 + $0x2] sm:$0x1]
    %v59 = vld [vmem:[#allocation4 + $0x3] sm:$0x1]
    %v60 = vld [vmem:[#allocation2] sm:$0xff]
    %v61 = vld [vmem:[#allocation2 + $0x8] sm:$0xff]
    %v62 = vperm.slane %v54, 0
    %vm63 = vcmask 130048
    %v65 = vsel %vm63, %v53, 0
    %67 = vmatpush.msra.mxu0 0.0
    %68 = vmatpush.msra.mxu0 0.0
    %69 = vmatpush.msra.mxu0 0.0
    %70 = vmatpush.msra.mxu0 0.0
    %71 = vmatpush.msra.mxu0 0.0
    %72 = vmatpush.msra.mxu0 0.0
    %73 = vmatpush.msra.mxu0 0.0
    %74 = vmatpush.msra.mxu0 0.0
    %75 = vmatpush.msra.mxu0 0.0
    %76 = vmatpush.msra.mxu0 0.0
    %77 = vmatpush.msra.mxu0 0.0
    %78 = vmatpush.msra.mxu0 0.0
    %79 = vmatpush.msra.mxu0 0.0
    %80 = vmatpush.msra.mxu0 0.0
    %81 = vmatpush.msra.mxu0 %v61
    %82 = vmatpush.msra.mxu0 %v60
    %83 = vmatmul.f32.gmra.mxu0 %v65
    %v84 = vpop.f32.mrf.mxu0
    %v85 = vadd.f32 %v62, %v84
    %86 = vdwg.mxu0
    %v87 = vmax.f32 %v85, 0.0
    %v88 = vld [vmem:[%s2] sm:$0xff]
    %v89 = vld [vmem:[%s2 + $0x8] sm:$0xff]
    %v90 = vld [vmem:[%s2 + $0x10] sm:$0xff]
    %v91 = vld [vmem:[%s2 + $0x18] sm:$0xff]
    %v92 = vld [vmem:[%s2 + $0x20] sm:$0xff]
    %v93 = vld [vmem:[%s2 + $0x28] sm:$0xff]
    %v94 = vld [vmem:[%s2 + $0x30] sm:$0xff]
    %v95 = vld [vmem:[%s2 + $0x38] sm:$0xff]
    %v96 = vld [vmem:[%s2 + $0x40] sm:$0xff]
    %v97 = vld [vmem:[%s2 + $0x48] sm:$0xff]
    %v98 = vld [vmem:[%s2 + $0x50] sm:$0xff]
    %v99 = vld [vmem:[%s2 + $0x58] sm:$0xff]
    %v100 = vld [vmem:[%s2 + $0x60] sm:$0xff]
    %v101 = vld [vmem:[%s2 + $0x68] sm:$0xff]
    %v102 = vld [vmem:[%s2 + $0x70] sm:$0xff]
    %v103 = vld [vmem:[%s2 + $0x78] sm:$0xff]
    %v104 = vperm.slane %v55, 0
    %105 = vmatpush.msra.mxu0 %v103
    %106 = vmatpush.msra.mxu0 %v102
    %107 = vmatpush.msra.mxu0 %v101
    %108 = vmatpush.msra.mxu0 %v100
    %109 = vmatpush.msra.mxu0 %v99
    %110 = vmatpush.msra.mxu0 %v98
    %111 = vmatpush.msra.mxu0 %v97
    %112 = vmatpush.msra.mxu0 %v96
    %113 = vmatpush.msra.mxu0 %v95
    %114 = vmatpush.msra.mxu0 %v94
    %115 = vmatpush.msra.mxu0 %v93
    %116 = vmatpush.msra.mxu0 %v92
    %117 = vmatpush.msra.mxu0 %v91
    %118 = vmatpush.msra.mxu0 %v90
    %119 = vmatpush.msra.mxu0 %v89
    %120 = vmatpush.msra.mxu0 %v88
    %121 = vmatmul.f32.gmra.mxu0 %v87
    %v122 = vpop.f32.mrf.mxu0
    %v123 = vadd.f32 %v104, %v122
    %124 = vdwg.mxu0
    %v125 = vmax.f32 %v123, 0.0
    %v126 = vld [vmem:[%s3] sm:$0xff]
    %v127 = vld [vmem:[%s3 + $0x8] sm:$0xff]
    %v128 = vld [vmem:[%s3 + $0x10] sm:$0xff]
    %v129 = vld [vmem:[%s3 + $0x18] sm:$0xff]
    %v130 = vld [vmem:[%s3 + $0x20] sm:$0xff]
    %v131 = vld [vmem:[%s3 + $0x28] sm:$0xff]
    %v132 = vld [vmem:[%s3 + $0x30] sm:$0xff]
    %v133 = vld [vmem:[%s3 + $0x38] sm:$0xff]
    %v134 = vld [vmem:[%s3 + $0x40] sm:$0xff]
    %v135 = vld [vmem:[%s3 + $0x48] sm:$0xff]
    %v136 = vld [vmem:[%s3 + $0x50] sm:$0xff]
    %v137 = vld [vmem:[%s3 + $0x58] sm:$0xff]
    %v138 = vld [vmem:[%s3 + $0x60] sm:$0xff]
    %v139 = vld [vmem:[%s3 + $0x68] sm:$0xff]
    %v140 = vld [vmem:[%s3 + $0x70] sm:$0xff]
    %v141 = vld [vmem:[%s3 + $0x78] sm:$0xff]
    %v142 = vperm.slane %v56, 0
    %143 = vmatpush.msra.mxu0 %v141
    %144 = vmatpush.msra.mxu0 %v140
    %145 = vmatpush.msra.mxu0 %v139
    %146 = vmatpush.msra.mxu0 %v138
    %147 = vmatpush.msra.mxu0 %v137
    %148 = vmatpush.msra.mxu0 %v136
    %149 = vmatpush.msra.mxu0 %v135
    %150 = vmatpush.msra.mxu0 %v134
    %151 = vmatpush.msra.mxu0 %v133
    %152 = vmatpush.msra.mxu0 %v132
    %153 = vmatpush.msra.mxu0 %v131
    %154 = vmatpush.msra.mxu0 %v130
    %155 = vmatpush.msra.mxu0 %v129
    %156 = vmatpush.msra.mxu0 %v128
    %157 = vmatpush.msra.mxu0 %v127
    %158 = vmatpush.msra.mxu0 %v126
    %159 = vmatmul.f32.gmra.mxu0 %v125
    %v160 = vpop.f32.mrf.mxu0
    %v161 = vadd.f32 %v142, %v160
    %162 = vdwg.mxu0
    %v163 = vtanh.pop %v161
    %v164 = vperm.slane %v57, 0
    %v165 = vmul.f32 %v163, %v164
    %v166 = vperm.slane %v58, 0
    %v167 = vadd.f32 %v165, %v166
    %v168 = vmax.f32 %v161, -6.9077554
    %v169 = vmin.f32 %v168, 6.9077554
    %v170 = vperm.slane %v59, 0
    %v171 = vmul.f32 %v170, %v167
    %v172 = vsub.f32 1.0, %v59
    %v173 = vperm.slane %v172, 0
    %v174 = vmul.f32 %v173, %v169
    %v175 = vadd.f32 %v171, %v174
    %vm176 = vcmask 64512
    %177 = vst.msk [vmem:[%s6] sm:$0xff] %vm176, %v175
    // Predicated region
    $region34: #{gaussian_forward.1} parent=1 // pred_check
      _
    $region35: #{gaussian_forward.1} parent=1 // pred_check_branch
      %179 = sbr.rel (0) target = $region37
    $region36: #{gaussian_forward.1} parent=1 // pred_region
      _
    $region37: #{gaussian_forward.1} parent=1 // pred_fallthru
      _
    // Predicated region
    $region38: #{gaussian_forward.1} parent=1 // pred_check
      _
    $region39: #{gaussian_forward.1} parent=1 // pred_check_branch
      %181 = sbr.rel (0) target = $region41
    $region40: #{gaussian_forward.1} parent=1 // pred_region
      _
    $region41: #{gaussian_forward.1} parent=1 // pred_fallthru
      _
    %182 = vsyncpa [#allocation3], 1
    %183 = vsyncpa [#allocation5], 1

</llo_original>
